<compile_context>
chip_gen: v5e
topology: v5e:2x2
jax: 0.10.0
libtpu: 0.0.40
codegen_flags: <defaults>
</compile_context>

<pallas_src>
import math

import jax
import jax.numpy as jnp
from jax import lax
from jax.experimental import pallas as pl
from jax.experimental.pallas import tpu as pltpu


_NEG_BIG = -1e30  # pad value for invalid component columns -> softmax weight exactly 0


def _round_up(n, m):
    return ((n + m - 1) // m) * m


def _choose_batch_tile(B, tb_max=1024):
    """Batch tile: large tiles to approach the HBM roofline, but >= 2 grid blocks whenever
    the batch allows it so v7x's two TensorCores both get work ('parallel' grid axis)."""
    b8 = _round_up(B, 8)
    tb = min(tb_max, b8)
    if b8 >= 16 and _round_up(B, tb) // tb < 2:
        tb = max(8, _round_up(b8 // 2, 8))
    b_pad = _round_up(B, tb)
    return tb, b_pad, b_pad // tb


# --------------------------------------------------------------------------------------
# Pass 1: per-block partial sums of quad[b,t] = sum_d (x^2*w - 2*x*mu*w).
# (N_t_gaussian = B*bias - sum_b quad; padded x rows are zero so they contribute 0.)
# --------------------------------------------------------------------------------------
def _make_pass1_kernel(TB, Tpad):
    def kernel(x_ref, wT_ref, nmwT_ref, qsum_ref):
        x = x_ref[...]                                                   # (TB, D) f32
        # Two accumulating MXU dots (no (TB, 2D) concat temporary).
        quad = jnp.dot(x * x, wT_ref[...], preferred_element_type=jnp.float32)
        quad = quad + jnp.dot(x, nmwT_ref[...], preferred_element_type=jnp.float32)
        # Reduce (TB, Tpad) -> (8, Tpad) by summing groups of 8 consecutive rows:
        # pure elementwise vreg adds (VPU); the wrapper finishes the tiny sublane sum.
        qsum_ref[...] = jnp.sum(quad.reshape(TB // 8, 8, Tpad), axis=0)

    return kernel


# --------------------------------------------------------------------------------------
# Pass 2: recompute mix*kl_gaussian (mix pre-folded into operands), kl, softmax -> phi,
# and per-block likelihood partials.
# --------------------------------------------------------------------------------------
def _make_pass2_kernel(B, TB, Tpad):
    def kernel(x_ref, logpi_ref, wTm_ref, nmwTm_ref, biasm_ref, omm_ref,
               phi_ref, lik_ref):
        i = pl.program_id(0)

        x = x_ref[...]                                                   # (TB, D)
        quad = jnp.dot(x * x, wTm_ref[...], preferred_element_type=jnp.float32)
        quad = quad + jnp.dot(x, nmwTm_ref[...], preferred_element_type=jnp.float32)
        mklg = biasm_ref[...] - quad            # = mix * kl_gaussian (pad comps: -1e30)
        kl = mklg + omm_ref[...] * logpi_ref[...]   # (1-mix)*log_pi; pad comps stay -1e30

        kl_max = jnp.max(kl, axis=1, keepdims=True)
        e = jnp.exp(kl - kl_max)                # padded components underflow to exactly 0
        denom = jnp.sum(e, axis=1, keepdims=True)
        phi = e / denom                         # exact normalization
        phi_ref[...] = phi

        # Likelihood partial: sum_b phi * (mix*kl_gaussian).  Only the last block has
        # padded rows; mask them with a minimal-rank (TB,1) iota.  Padded component
        # columns contribute phi==0 exactly, so no component mask is needed.
        rid = lax.broadcasted_iota(jnp.int32, (TB, 1), 0)
        rmask = (rid < (B - i * TB)).astype(jnp.float32)
        prod = phi * mklg * rmask
        lik_ref[...] = jnp.sum(prod.reshape(TB // 8, 8, Tpad), axis=0)

    return kernel


# --------------------------------------------------------------------------------------
# Wrappers
# --------------------------------------------------------------------------------------
def sample_log_pi(gamma_1, gamma_2, batch_size, key):
    """sample_beta + stick-breaking mix_weights, done directly in log space."""
    T = gamma_1.shape[0]
    beta = jax.random.beta(key, gamma_1[None, :], gamma_2[None, :],
                           shape=(batch_size, T)).astype(jnp.float32)
    beta = jnp.clip(beta, 1e-30, 1.0 - 1e-7)          # guard log(0) / log1p(-1)
    log_beta = jnp.log(beta)
    log_1mb_cum = jnp.cumsum(jnp.log1p(-beta), axis=-1)
    # log pi_t = log beta_t + sum_{j<t} log(1 - beta_j)  (== log(mix_weights(beta)[:, :-1]))
    log_pi = log_beta + jnp.pad(log_1mb_cum, ((0, 0), (1, 0)))[:, :-1]
    return log_pi                                      # (B, T)


def dp_forward_from_log_pi(x, mu, rho, log_pi):
    """Functional DirichletProcess_VI.forward given precomputed log_pi.

    Returns (likelihood_scalar, phi_new)."""
    x = x.astype(jnp.float32)
    mu = mu.astype(jnp.float32)
    rho = rho.astype(jnp.float32)
    log_pi = log_pi.astype(jnp.float32)

    B, D = x.shape
    T = mu.shape[0]

    Tpad = _round_up(max(T, 128), 128)                 # lane-dense component axis
    TB, B_pad, nblocks = _choose_batch_tile(B)
    padT = Tpad - T

    # ---- parameter-only precompute, hoisted out of the kernels, (D, T) layout ----
    std = jax.nn.softplus(rho)                         # (T, D)  sigma = log1p(exp(rho))
    w = 0.5 / (std * std)                              # (T, D)  = 1 / (2 sigma^2)
    wT = w.T                                           # (D, T)
    nmwT = (-2.0 * mu * w).T                           # (D, T)
    bias = 0.5 * D - jnp.sum(mu * mu * w, axis=1)      # (T,)   kl_gaussian bias

    wT_p = jnp.pad(wT, ((0, 0), (0, padT)))            # (D, Tpad)
    nmwT_p = jnp.pad(nmwT, ((0, 0), (0, padT)))        # (D, Tpad)
    x_p = jnp.pad(x, ((0, B_pad - B), (0, 0)))         # (B_pad, D)
    logpi_p = jnp.pad(log_pi, ((0, B_pad - B), (0, padT)))   # (B_pad, Tpad)

    cparams = pltpu.CompilerParams(
        dimension_semantics=("parallel",),             # batch blocks are independent per pass
        vmem_limit_bytes=32 * 1024 * 1024,             # safe on v5e/v6e/v7x for TB<=1024 tiles
    )

    # -------------------------------- pass 1 --------------------------------
    qsum_parts = pl.pallas_call(
        _make_pass1_kernel(TB, Tpad),
        grid=(nblocks,),
        in_specs=[
            pl.BlockSpec((TB, D), lambda i: (i, 0)),          # x block
            pl.BlockSpec((D, Tpad), lambda i: (0, 0)),        # w.T           (constant)
            pl.BlockSpec((D, Tpad), lambda i: (0, 0)),        # (-2*mu*w).T   (constant)
        ],
        out_specs=pl.BlockSpec((8, Tpad), lambda i: (i, 0)),  # per-block quad partial
        out_shape=jax.ShapeDtypeStruct((8 * nblocks, Tpad), jnp.float32),
        compiler_params=cparams,
    )(x_p, wT_p, nmwT_p)

    # ---- tiny T-length finalize + guarded mix coefficient (plain JAX) ----
    quad_sum = jnp.sum(qsum_parts, axis=0)[:T]                       # (T,)
    n_t_gaussian = B * bias - quad_sum                               # (T,)
    n_t_pi = jnp.sum(log_pi, axis=0)                                 # (T,)
    den = n_t_gaussian + n_t_pi
    den = jnp.where(jnp.abs(den) < 1e-12,
                    jnp.where(den >= 0, 1e-12, -1e-12), den)         # guard /0
    mix = n_t_pi / den                                               # (T,)

    # ---- fold mix into the pass-2 operands (tiny wrapper-side ops) ----
    wTm_p = jnp.pad(wT * mix[None, :], ((0, 0), (0, padT)))          # (D, Tpad)
    nmwTm_p = jnp.pad(nmwT * mix[None, :], ((0, 0), (0, padT)))      # (D, Tpad)
    biasm_p = jnp.pad((bias * mix)[None, :], ((0, 0), (0, padT)),
                      constant_values=_NEG_BIG)                      # (1, Tpad)
    omm_p = jnp.pad((1.0 - mix)[None, :], ((0, 0), (0, padT)))       # (1, Tpad)

    # -------------------------------- pass 2 --------------------------------
    phi_p, lik_parts = pl.pallas_call(
        _make_pass2_kernel(B, TB, Tpad),
        grid=(nblocks,),
        in_specs=[
            pl.BlockSpec((TB, D), lambda i: (i, 0)),          # x block
            pl.BlockSpec((TB, Tpad), lambda i: (i, 0)),       # log_pi block
            pl.BlockSpec((D, Tpad), lambda i: (0, 0)),        # mix * w.T         (constant)
            pl.BlockSpec((D, Tpad), lambda i: (0, 0)),        # mix * (-2*mu*w).T (constant)
            pl.BlockSpec((1, Tpad), lambda i: (0, 0)),        # mix * bias        (constant)
            pl.BlockSpec((1, Tpad), lambda i: (0, 0)),        # 1 - mix           (constant)
        ],
        out_specs=(
            pl.BlockSpec((TB, Tpad), lambda i: (i, 0)),       # phi block
            pl.BlockSpec((8, Tpad), lambda i: (i, 0)),        # per-block likelihood partial
        ),
        out_shape=(
            jax.ShapeDtypeStruct((B_pad, Tpad), jnp.float32),
            jax.ShapeDtypeStruct((8 * nblocks, Tpad), jnp.float32),
        ),
        compiler_params=cparams,
    )(x_p, logpi_p, wTm_p, nmwTm_p, biasm_p, omm_p)

    likelihood = jnp.sum(lik_parts) / float(B)        # (phi * mix*kl_gaussian).sum(1).mean(0)
    phi_new = phi_p[:B, :T]
    return likelihood, phi_new


def dp_forward(x, mu, rho, gamma_1, gamma_2, eta, key):
    del eta  # only used by the stateful update_gamma, which does not affect the output
    log_pi = sample_log_pi(gamma_1, gamma_2, x.shape[0], key)
    return dp_forward_from_log_pi(x, mu, rho, log_pi)


# --------------------------------------------------------------------------------------
# Pure-JAX reference (mirrors the PyTorch math, same guarded mix), for validation.
# --------------------------------------------------------------------------------------
def _dp_forward_reference(x, mu, rho, log_pi):
    std = jax.nn.softplus(rho)                                                # (T, D)
    D = x.shape[1]
    log_pdf = jnp.sum(
        -math.log(math.sqrt(2.0 * math.pi)) - jnp.log(std)[None]
        - (x[:, None, :] - mu[None]) ** 2 / (2.0 * std[None] ** 2), axis=-1)  # (B, T)
    entropy = 0.5 * D * (math.log(2.0 * math.pi) + 1.0) + jnp.sum(jnp.log(std), axis=1)
    kl_gaussian = log_pdf + entropy[None]
    kl_pi = log_pi
    n_g = jnp.sum(kl_gaussian, axis=0, keepdims=True)
    n_pi = jnp.sum(kl_pi, axis=0, keepdims=True)
    den = n_g + n_pi
    den = jnp.where(jnp.abs(den) < 1e-12, jnp.where(den >= 0, 1e-12, -1e-12), den)
    mix = n_pi / den
    kl = mix * kl_gaussian + (1.0 - mix) * kl_pi
    phi = jax.nn.softmax(kl, axis=1)
    lik = jnp.mean(jnp.sum(phi * (mix * kl_gaussian), axis=1))
    return lik, phi


if __name__ == "__main__":
    # Small shapes consistent with the module (trunc=T components, dim=D features).
    # B=12 exercises multi-block (2 blocks of 8) + padded batch rows + padded components.
    B, D, T = 12, 128, 8
    eta = 1.0

    root = jax.random.PRNGKey(0)
    k_x, k_mu, k_rho, k_beta = jax.random.split(root, 4)

    # Deterministic parameter init matching __init__: uniform(-0.5, 0.5) per component.
    mu = jax.random.uniform(k_mu, (T, D), minval=-0.5, maxval=0.5, dtype=jnp.float32)
    rho = jax.random.uniform(k_rho, (T, D), minval=-0.5, maxval=0.5, dtype=jnp.float32)
    gamma_1 = jnp.ones((T,), jnp.float32)
    gamma_2 = jnp.ones((T,), jnp.float32) * eta

    x = jax.random.normal(k_x, (B, D), dtype=jnp.float32)

    log_pi = sample_log_pi(gamma_1, gamma_2, B, k_beta)
    likelihood, phi_new = dp_forward_from_log_pi(x, mu, rho, log_pi)
    likelihood = jax.block_until_ready(likelihood)
    phi_new = jax.block_until_ready(phi_new)

    lik_ref, phi_ref = _dp_forward_reference(x, mu, rho, log_pi)

    assert phi_new.shape == (B, T)
    assert likelihood.shape == ()
    assert bool(jnp.all(jnp.isfinite(phi_new)))
    assert bool(jnp.isfinite(likelihood))
    assert bool(jnp.allclose(jnp.sum(phi_new, axis=1), 1.0, atol=1e-3))
    assert bool(jnp.allclose(likelihood, lik_ref, rtol=3e-2, atol=3e-2))
    assert bool(jnp.allclose(phi_new, phi_ref, rtol=3e-2, atol=3e-2))
    print("KERNEL_OK")
</pallas_src>

<mosaic_0001>
module attributes {stable_mosaic.version = 11 : i64} {
  func.func @kernel(%arg0: i32, %arg1: memref<8x128xf32, #tpu.memory_space<vmem>>, %arg2: memref<128x128xf32, #tpu.memory_space<vmem>>, %arg3: memref<128x128xf32, #tpu.memory_space<vmem>>, %arg4: memref<8x128xf32, #tpu.memory_space<vmem>>) attributes {dimension_semantics = [#tpu.dimension_semantics<parallel>], iteration_bounds = array<i64: 2>, scalar_prefetch = 0 : i64, scratch_operands = 0 : i64, tpu.core_type = #tpu.core_type<tc>, window_params = [{transform_indices = @transform_0, window_bounds = array<i64: 8, 128>}, {pipeline_mode = #tpu.pipeline_mode<synchronous>, transform_indices = @transform_1, window_bounds = array<i64: 128, 128>}, {pipeline_mode = #tpu.pipeline_mode<synchronous>, transform_indices = @transform_2, window_bounds = array<i64: 128, 128>}, {transform_indices = @transform_3, window_bounds = array<i64: 8, 128>}]} {
    %c0 = arith.constant 0 : index
    %c0_0 = arith.constant 0 : index
    %0 = vector.load %arg1[%c0, %c0_0] : memref<8x128xf32, #tpu.memory_space<vmem>>, vector<8x128xf32>
    %1 = arith.mulf %0, %0 : vector<8x128xf32>
    %c0_1 = arith.constant 0 : index
    %c0_2 = arith.constant 0 : index
    %2 = vector.load %arg2[%c0_1, %c0_2] : memref<128x128xf32, #tpu.memory_space<vmem>>, vector<128x128xf32>
    %cst = arith.constant dense<0.000000e+00> : vector<8x128xf32>
    %3 = tpu.matmul %1, %2, %cst {dimension_numbers = #tpu.dot_dimension_numbers<[1], [0], [0], [1], [0, 0, 1, 1], [], []>} : vector<8x128xf32>, vector<128x128xf32>, vector<8x128xf32> -> vector<8x128xf32>
    %c0_3 = arith.constant 0 : index
    %c0_4 = arith.constant 0 : index
    %4 = vector.load %arg3[%c0_3, %c0_4] : memref<128x128xf32, #tpu.memory_space<vmem>>, vector<128x128xf32>
    %cst_5 = arith.constant dense<0.000000e+00> : vector<8x128xf32>
    %5 = tpu.matmul %0, %4, %cst_5 {dimension_numbers = #tpu.dot_dimension_numbers<[1], [0], [0], [1], [0, 0, 1, 1], [], []>} : vector<8x128xf32>, vector<128x128xf32>, vector<8x128xf32> -> vector<8x128xf32>
    %6 = arith.addf %3, %5 : vector<8x128xf32>
    %7 = vector.shape_cast %6 : vector<8x128xf32> to vector<1x8x128xf32>
    %cst_6 = arith.constant dense<0.000000e+00> : vector<8x128xf32>
    %8 = vector.multi_reduction <add>, %7, %cst_6 [0] : vector<1x8x128xf32> to vector<8x128xf32>
    %c0_7 = arith.constant 0 : index
    %c0_8 = arith.constant 0 : index
    %9 = vector.load %arg4[%c0_7, %c0_8] : memref<8x128xf32, #tpu.memory_space<vmem>>, vector<8x128xf32>
    tpu.vector_store %arg4[%c0_7, %c0_8], %8 {strides = array<i32>} : memref<8x128xf32, #tpu.memory_space<vmem>>, vector<8x128xf32>,
    return
  }
  func.func @transform_0(%arg0: i32) -> (i32, i32) {
    %c0_i32 = arith.constant 0 : i32
    %c0_i32_0 = arith.constant 0 : i32
    return %arg0, %c0_i32 : i32, i32
  }
  func.func @transform_1(%arg0: i32) -> (i32, i32) {
    %c0_i32 = arith.constant 0 : i32
    %c0_i32_0 = arith.constant 0 : i32
    %c0_i32_1 = arith.constant 0 : i32
    return %c0_i32, %c0_i32_0 : i32, i32
  }
  func.func @transform_2(%arg0: i32) -> (i32, i32) {
    %c0_i32 = arith.constant 0 : i32
    %c0_i32_0 = arith.constant 0 : i32
    %c0_i32_1 = arith.constant 0 : i32
    return %c0_i32, %c0_i32_0 : i32, i32
  }
  func.func @transform_3(%arg0: i32) -> (i32, i32) {
    %c0_i32 = arith.constant 0 : i32
    %c0_i32_0 = arith.constant 0 : i32
    return %arg0, %c0_i32 : i32, i32
  }
}

</mosaic_0001>

<llo_original>
// kernel: tpu_custom_call.1
$region0: #{tpu_custom_call.1}
  #allocation0 [shape = 'u32[]', space=smem, size = 0x4, offset = 0x4, fixed_abs, tag = 'smem constant byte address 0x4 - core index']
  #allocation1 [shape = 'u32[72,128]{1,0:T(1,128)}', space=vmem, size = 0x9000, scoped, tag = 'internal scratch']
  %s0 = inlined_call_operand.hbm [shape: f32[16,128], index: 0, kind: input, shape index: {}]
  %s1 = inlined_call_operand.hbm [shape: f32[128,128], index: 1, kind: input, shape index: {}]
  %s2 = inlined_call_operand.hbm [shape: f32[128,128], index: 2, kind: input, shape index: {}]
  %s3 = inlined_call_operand.hbm [shape: f32[16,128], index: 3, kind: output, shape index: {}]
  %s4 = sld [smem:[#allocation0]]
  $region57: #{tpu_custom_call.1} parent=0
    _
  %s6 = ssub.s32 1, %s4
  %s7 = scalar_select 0, %s6, %s4
  $region1: #{tpu_custom_call.1} parent=0
    #allocation2 [shape = 'u8[8192]{0}', space=vmem, size = 0x2000, scoped, tag = 'input window, operand 0']
    #allocation3 [shape = 's32[2]{0}', space=sflag, size = 0x8, scoped, tag = 'scoped memory for tpu_custom_call.1']
    #allocation4 [shape = 's32[2]{0}', space=sflag, size = 0x8, scoped, tag = 'scoped memory for tpu_custom_call.1']
    #allocation5 [shape = 'u8[65536]{0}', space=vmem, size = 0x10000, scoped, tag = 'input window, operand 1, single buffered']
    #allocation6 [shape = 's32[1]{0}', space=sflag, size = 0x4, scoped, tag = 'scoped memory for tpu_custom_call.1']
    #allocation7 [shape = 'u8[65536]{0}', space=vmem, size = 0x10000, scoped, tag = 'input window, operand 2, single buffered']
    #allocation8 [shape = 'u8[8192]{0}', space=vmem, size = 0x2000, scoped, tag = 'output window, operand 0']
    %8 = vsyncpa [#allocation3], 0
    %s9 = scalar_lea.sflag [#allocation3], 1
    %10 = vsyncpa %s9, 0
    %11 = vsyncpa [#allocation6], 0
    %12 = vsyncpa [#allocation4], 0
    %s13 = scalar_lea.sflag [#allocation4], 1
    %14 = vsyncpa %s13, 0
    loop: start=0, step=1, limit=4
    $region2: #{tpu_custom_call.1} parent=1 // loop_pre_header
      _
    $region3: #{tpu_custom_call.1} parent=1 // loop_header
      %s16 = sphi 0, %s20
      %p17 = scmp.ge.s32.totalorder %s16, 4
      %s26 = sphi 0, %s28
      %s29 = sphi 0, %s26
      %s30 = sphi 0, %s29
      %s46 = sphi 0, %s30
      %s50 = sphi 0, %s50
      %s52 = sphi 0, %s50
      %s53 = sphi 0, %s52
      %s67 = sphi 0, %s53
      %s71 = sphi 0, %s71
      %s73 = sphi 0, %s71
      %s74 = sphi 0, %s73
      %s88 = sphi 0, %s74
      %s94 = sphi 0, %s96
      %s97 = sphi 0, %s94
      %s98 = sphi 0, %s97
      %s114 = sphi 0, %s98
    $region4: #{tpu_custom_call.1} parent=1 // loop_header_branch
      %19 = sbr.rel (%p17) target = $region8
    $region5: #{tpu_custom_call.1} parent=1 // loop_body
      %s21 = ssub.s32 %s16, 1
      %s22 = ssub.s32 %s16, 2
      %s23 = sadd.s32 %s16, 1
      %s24 = ssub.s32 %s16, %s23
      %p25 = scmp.eq.s32.totalorder %s24, 0
      %s27 = sadd.s32 %s26, 1
      %s28 = scalar_select %p25, %s26, %s27
      %p31 = pneg %p25
      %p32 = scmp.eq.s32.totalorder %s16, 1
      %p33 = por %p31, %p32
      %p34 = scmp.ne.s32.totalorder %s26, %s29
      %p35 = scmp.eq.s32.totalorder %s16, 0
      %p36 = por %p34, %p35
      %p37 = scmp.ne.s32.totalorder %s26, %s29
      %p38 = scmp.eq.s32.totalorder %s21, 1
      %p39 = por %p37, %p38
      %p40 = scmp.ne.s32.totalorder %s29, %s30
      %p41 = scmp.eq.s32.totalorder %s21, 0
      %p42 = por %p40, %p41
      %p43 = scmp.ne.s32.totalorder %s29, %s30
      %p44 = scmp.eq.s32.totalorder %s22, 1
      %p45 = por %p43, %p44
      %p47 = scmp.ne.s32.totalorder %s30, %s46
      %p48 = scmp.eq.s32.totalorder %s22, 0
      %p49 = por %p47, %p48
      %s51 = sadd.s32 %s50, 1
      %p54 = scmp.eq.s32.totalorder %s16, 1
      %p55 = scmp.ne.s32.totalorder %s50, %s52
      %p56 = scmp.eq.s32.totalorder %s16, 0
      %p57 = por %p55, %p56
      %p58 = scmp.ne.s32.totalorder %s50, %s52
      %p59 = scmp.eq.s32.totalorder %s21, 1
      %p60 = por %p58, %p59
      %p61 = scmp.ne.s32.totalorder %s52, %s53
      %p62 = scmp.eq.s32.totalorder %s21, 0
      %p63 = por %p61, %p62
      %p64 = scmp.ne.s32.totalorder %s52, %s53
      %p65 = scmp.eq.s32.totalorder %s22, 1
      %p66 = por %p64, %p65
      %p68 = scmp.ne.s32.totalorder %s53, %s67
      %p69 = scmp.eq.s32.totalorder %s22, 0
      %p70 = por %p68, %p69
      %s72 = sadd.s32 %s71, 1
      %p75 = scmp.eq.s32.totalorder %s16, 1
      %p76 = scmp.ne.s32.totalorder %s71, %s73
      %p77 = scmp.eq.s32.totalorder %s16, 0
      %p78 = por %p76, %p77
      %p79 = scmp.ne.s32.totalorder %s71, %s73
      %p80 = scmp.eq.s32.totalorder %s21, 1
      %p81 = por %p79, %p80
      %p82 = scmp.ne.s32.totalorder %s73, %s74
      %p83 = scmp.eq.s32.totalorder %s21, 0
      %p84 = por %p82, %p83
      %p85 = scmp.ne.s32.totalorder %s73, %s74
      %p86 = scmp.eq.s32.totalorder %s22, 1
      %p87 = por %p85, %p86
      %p89 = scmp.ne.s32.totalorder %s74, %s88
      %p90 = scmp.eq.s32.totalorder %s22, 0
      %p91 = por %p89, %p90
      %s92 = ssub.s32 %s16, %s23
      %p93 = scmp.eq.s32.totalorder %s92, 0
      %s95 = sadd.s32 %s94, 1
      %s96 = scalar_select %p93, %s94, %s95
      %p99 = pneg %p93
      %p100 = scmp.eq.s32.totalorder %s16, 1
      %p101 = por %p99, %p100
      %p102 = scmp.ne.s32.totalorder %s94, %s97
      %p103 = scmp.eq.s32.totalorder %s16, 0
      %p104 = por %p102, %p103
      %p105 = scmp.ne.s32.totalorder %s94, %s97
      %p106 = scmp.eq.s32.totalorder %s21, 1
      %p107 = por %p105, %p106
      %p108 = scmp.ne.s32.totalorder %s97, %s98
      %p109 = scmp.eq.s32.totalorder %s21, 0
      %p110 = por %p108, %p109
      %p111 = scmp.ne.s32.totalorder %s97, %s98
      %p112 = scmp.eq.s32.totalorder %s22, 1
      %p113 = por %p111, %p112
      %p115 = scmp.ne.s32.totalorder %s98, %s114
      %p116 = scmp.eq.s32.totalorder %s22, 0
      %p117 = por %p115, %p116
      %p118 = scmp.le.s32.totalorder 1, %s16
      %p119 = scmp.lt.s32.totalorder %s16, 3
      %p120 = pnand %p118, %p119
      %p121 = pneg %p120
      // Predicated region
      $region9: #{tpu_custom_call.1} parent=5 // pred_check
        _
      $region10: #{tpu_custom_call.1} parent=5 // pred_check_branch
        %123 = sbr.rel (%p120) target = $region12
      $region11: #{tpu_custom_call.1} parent=5 // pred_region
        %s124 = ssub.s32 %s16, 1
        // Predicated region
        $region13: #{tpu_custom_call.1} parent=11 // pred_check
          %p125 = pneg %p63
        $region14: #{tpu_custom_call.1} parent=11 // pred_check_branch
          %127 = sbr.rel (%p125) target = $region16
        $region15: #{tpu_custom_call.1} parent=11 // pred_region
          %129 = vsyncadd [#allocation6], 0
          %s130 = sshll.u32 %s1, 4
          %s131 = int_to_ptr.hbm [resolvable:$true] %s130
          %s132 = sshll.u32 [#allocation5], 4
          %s133 = int_to_ptr.vmem [resolvable:$true] %s132
          %138 = dma.hbm_to_vmem [thread:$0]  %s131, 2048, %s133, [#allocation6], 128, 128, 8
        $region16: #{tpu_custom_call.1} parent=11 // pred_fallthru
          _
        // Predicated region
        $region17: #{tpu_custom_call.1} parent=11 // pred_check
          %p139 = pneg %p84
        $region18: #{tpu_custom_call.1} parent=11 // pred_check_branch
          %141 = sbr.rel (%p139) target = $region20
        $region19: #{tpu_custom_call.1} parent=11 // pred_region
          %143 = vsyncadd [#allocation6], 0
          %s144 = sshll.u32 %s2, 4
          %s145 = int_to_ptr.hbm [resolvable:$true] %s144
          %s146 = sshll.u32 [#allocation7], 4
          %s147 = int_to_ptr.vmem [resolvable:$true] %s146
          %152 = dma.hbm_to_vmem [thread:$0]  %s145, 2048, %s147, [#allocation6], 128, 128, 8
        $region20: #{tpu_custom_call.1} parent=11 // pred_fallthru
          _
      $region12: #{tpu_custom_call.1} parent=5 // pred_fallthru
        _
      %p153 = scmp.lt.s32.totalorder %s16, 2
      // Predicated region
      $region21: #{tpu_custom_call.1} parent=5 // pred_check
        %p154 = pneg %p153
      $region22: #{tpu_custom_call.1} parent=5 // pred_check_branch
        %156 = sbr.rel (%p154) target = $region24
      $region23: #{tpu_custom_call.1} parent=5 // pred_region
        // Predicated region
        $region25: #{tpu_custom_call.1} parent=23 // pred_check
          %p157 = pneg %p36
        $region26: #{tpu_custom_call.1} parent=23 // pred_check_branch
          %159 = sbr.rel (%p157) target = $region28
        $region27: #{tpu_custom_call.1} parent=23 // pred_region
          %s160 = sand.u32 %s26, 1
          %s161 = scalar_lea.sflag [#allocation3], %s160
          %s162 = sand.u32 %s26, 1
          %s163 = smul.addr %s162, 8
          %s164 = scalar_lea.vmem [#allocation2], %s163
          %166 = vsyncadd %s161, 0
          %s167 = smul.addr %s16, 8
          %s168 = scalar_lea.hbm %s0, %s167
          %s170 = sshll.u32 %s168, 4
          %s171 = int_to_ptr.hbm [resolvable:$true] %s170
          %s172 = sshll.u32 %s164, 4
          %s173 = int_to_ptr.vmem [resolvable:$true] %s172
          %175 = dma.hbm_to_vmem [thread:$0]  %s171, 128, %s173, %s161
        $region28: #{tpu_custom_call.1} parent=23 // pred_fallthru
          _
      $region24: #{tpu_custom_call.1} parent=5 // pred_fallthru
        _
      %p176 = scmp.le.s32.totalorder 1, %s16
      %p177 = scmp.lt.s32.totalorder %s16, 3
      %p178 = pnand %p176, %p177
      %p179 = pneg %p178
      // Predicated region
      $region29: #{tpu_custom_call.1} parent=5 // pred_check
        _
      $region30: #{tpu_custom_call.1} parent=5 // pred_check_branch
        %181 = sbr.rel (%p178) target = $region32
      $region31: #{tpu_custom_call.1} parent=5 // pred_region
        %s182 = ssub.s32 %s16, 1
        %s183 = sand.u32 %s29, 1
        %s184 = scalar_lea.sflag [#allocation3], %s183
        %s185 = sand.u32 %s29, 1
        %s186 = smul.addr %s185, 8
        %s187 = scalar_lea.vmem [#allocation2], %s186
        // Predicated region
        $region33: #{tpu_custom_call.1} parent=31 // pred_check
          %p188 = pneg %p42
        $region34: #{tpu_custom_call.1} parent=31 // pred_check_branch
          %190 = sbr.rel (%p188) target = $region36
        $region35: #{tpu_custom_call.1} parent=31 // pred_region
          %192 = dma.done %s184, 128
        $region36: #{tpu_custom_call.1} parent=31 // pred_fallthru
          _
        // Predicated region
        $region37: #{tpu_custom_call.1} parent=31 // pred_check
          %p193 = pneg %p63
        $region38: #{tpu_custom_call.1} parent=31 // pred_check_branch
          %195 = sbr.rel (%p193) target = $region40
        $region39: #{tpu_custom_call.1} parent=31 // pred_region
          %197 = dma.done [#allocation6], 2048
        $region40: #{tpu_custom_call.1} parent=31 // pred_fallthru
          _
        // Predicated region
        $region41: #{tpu_custom_call.1} parent=31 // pred_check
          %p198 = pneg %p84
        $region42: #{tpu_custom_call.1} parent=31 // pred_check_branch
          %200 = sbr.rel (%p198) target = $region44
        $region43: #{tpu_custom_call.1} parent=31 // pred_region
          %202 = dma.done [#allocation6], 2048
        $region44: #{tpu_custom_call.1} parent=31 // pred_fallthru
          _
        %s203 = sand.u32 %s29, 1
        %s204 = scalar_lea.sflag [#allocation3], %s203
        %s205 = sand.u32 %s29, 1
        %s206 = smul.addr %s205, 8
        %s207 = scalar_lea.vmem [#allocation2], %s206
        %p208 = pneg %p42
        %p209 = pneg %p39
        %p210 = pneg %p63
        %p211 = pneg %p60
        %p212 = pneg %p84
        %p213 = pneg %p81
        %p214 = pneg %p110
        %p215 = pneg %p107
        %s216 = sand.u32 %s97, 1
        %s217 = scalar_lea.sflag [#allocation4], %s216
        %s218 = sand.u32 %s97, 1
        %s219 = smul.addr %s218, 8
        %s220 = scalar_lea.vmem [#allocation8], %s219
        %v221 = vld [vmem:[%s187] sm:$0xff]
        %v222 = vmul.f32 %v221, %v221
        %v223 = vld [vmem:[#allocation5] sm:$0xff]
        %v224 = vld [vmem:[#allocation5 + $0x8] sm:$0xff]
        %v225 = vld [vmem:[#allocation5 + $0x10] sm:$0xff]
        %v226 = vld [vmem:[#allocation5 + $0x18] sm:$0xff]
        %v227 = vld [vmem:[#allocation5 + $0x20] sm:$0xff]
        %v228 = vld [vmem:[#allocation5 + $0x28] sm:$0xff]
        %v229 = vld [vmem:[#allocation5 + $0x30] sm:$0xff]
        %v230 = vld [vmem:[#allocation5 + $0x38] sm:$0xff]
        %v231 = vld [vmem:[#allocation5 + $0x40] sm:$0xff]
        %v232 = vld [vmem:[#allocation5 + $0x48] sm:$0xff]
        %v233 = vld [vmem:[#allocation5 + $0x50] sm:$0xff]
        %v234 = vld [vmem:[#allocation5 + $0x58] sm:$0xff]
        %v235 = vld [vmem:[#allocation5 + $0x60] sm:$0xff]
        %v236 = vld [vmem:[#allocation5 + $0x68] sm:$0xff]
        %v237 = vld [vmem:[#allocation5 + $0x70] sm:$0xff]
        %v238 = vld [vmem:[#allocation5 + $0x78] sm:$0xff]
        %v239 = vld [vmem:[#allocation7] sm:$0xff]
        %v240 = vld [vmem:[#allocation7 + $0x8] sm:$0xff]
        %v241 = vld [vmem:[#allocation7 + $0x10] sm:$0xff]
        %v242 = vld [vmem:[#allocation7 + $0x18] sm:$0xff]
        %v243 = vld [vmem:[#allocation7 + $0x20] sm:$0xff]
        %v244 = vld [vmem:[#allocation7 + $0x28] sm:$0xff]
        %v245 = vld [vmem:[#allocation7 + $0x30] sm:$0xff]
        %v246 = vld [vmem:[#allocation7 + $0x38] sm:$0xff]
        %v247 = vld [vmem:[#allocation7 + $0x40] sm:$0xff]
        %v248 = vld [vmem:[#allocation7 + $0x48] sm:$0xff]
        %v249 = vld [vmem:[#allocation7 + $0x50] sm:$0xff]
        %v250 = vld [vmem:[#allocation7 + $0x58] sm:$0xff]
        %v251 = vld [vmem:[#allocation7 + $0x60] sm:$0xff]
        %v252 = vld [vmem:[#allocation7 + $0x68] sm:$0xff]
        %v253 = vld [vmem:[#allocation7 + $0x70] sm:$0xff]
        %v254 = vld [vmem:[#allocation7 + $0x78] sm:$0xff]
        %255 = vmatpush.msra.mxu0 %v254
        %256 = vmatpush.msra.mxu0 %v253
        %257 = vmatpush.msra.mxu0 %v252
        %258 = vmatpush.msra.mxu0 %v251
        %259 = vmatpush.msra.mxu0 %v250
        %260 = vmatpush.msra.mxu0 %v249
        %261 = vmatpush.msra.mxu0 %v248
        %262 = vmatpush.msra.mxu0 %v247
        %263 = vmatpush.msra.mxu0 %v246
        %264 = vmatpush.msra.mxu0 %v245
        %265 = vmatpush.msra.mxu0 %v244
        %266 = vmatpush.msra.mxu0 %v243
        %267 = vmatpush.msra.mxu0 %v242
        %268 = vmatpush.msra.mxu0 %v241
        %269 = vmatpush.msra.mxu0 %v240
        %270 = vmatpush.msra.mxu0 %v239
        %271 = vmatmul.f32.gmra.mxu0 %v221
        %v272 = vpop.f32.mrf.mxu0
        %v273 = vadd.f32 0.0, %v272
        %274 = vdwg.mxu0
        %275 = vmatpush.msra.mxu0 %v238
        %276 = vmatpush.msra.mxu0 %v237
        %277 = vmatpush.msra.mxu0 %v236
        %278 = vmatpush.msra.mxu0 %v235
        %279 = vmatpush.msra.mxu0 %v234
        %280 = vmatpush.msra.mxu0 %v233
        %281 = vmatpush.msra.mxu0 %v232
        %282 = vmatpush.msra.mxu0 %v231
        %283 = vmatpush.msra.mxu0 %v230
        %284 = vmatpush.msra.mxu0 %v229
        %285 = vmatpush.msra.mxu0 %v228
        %286 = vmatpush.msra.mxu0 %v227
        %287 = vmatpush.msra.mxu0 %v226
        %288 = vmatpush.msra.mxu0 %v225
        %289 = vmatpush.msra.mxu0 %v224
        %290 = vmatpush.msra.mxu0 %v223
        %291 = vmatmul.f32.gmra.mxu0 %v222
        %v292 = vpop.f32.mrf.mxu0
        %v293 = vadd.f32 %v273, %v292
        %294 = vdwg.mxu0
        %v295 = vadd.f32 %v293, 0.0
        %296 = vst [vmem:[%s220] sm:$0xff] %v295
        %s297 = sand.u32 %s97, 1
        %s298 = scalar_lea.sflag [#allocation4], %s297
        %s299 = sand.u32 %s97, 1
        %s300 = smul.addr %s299, 8
        %s301 = scalar_lea.vmem [#allocation8], %s300
        // Predicated region
        $region45: #{tpu_custom_call.1} parent=31 // pred_check
          %p302 = pneg %p107
        $region46: #{tpu_custom_call.1} parent=31 // pred_check_branch
          %304 = sbr.rel (%p302) target = $region48
        $region47: #{tpu_custom_call.1} parent=31 // pred_region
          %306 = vsyncadd %s298, 0
          %s307 = smul.addr %s21, 8
          %s308 = scalar_lea.hbm %s3, %s307
          %s310 = sshll.u32 %s301, 4
          %s311 = int_to_ptr.vmem [resolvable:$true] %s310
          %s312 = sshll.u32 %s308, 4
          %s313 = int_to_ptr.hbm [resolvable:$true] %s312
          %315 = dma.vmem_to_hbm [thread:$0]  %s311, 128, %s313, %s298
        $region48: #{tpu_custom_call.1} parent=31 // pred_fallthru
          _
      $region32: #{tpu_custom_call.1} parent=5 // pred_fallthru
        _
      %p316 = scmp.le.s32.totalorder 2, %s16
      // Predicated region
      $region49: #{tpu_custom_call.1} parent=5 // pred_check
        %p317 = pneg %p316
      $region50: #{tpu_custom_call.1} parent=5 // pred_check_branch
        %319 = sbr.rel (%p317) target = $region52
      $region51: #{tpu_custom_call.1} parent=5 // pred_region
        %s320 = ssub.s32 %s16, 2
        // Predicated region
        $region53: #{tpu_custom_call.1} parent=51 // pred_check
          %p321 = pneg %p113
        $region54: #{tpu_custom_call.1} parent=51 // pred_check_branch
          %323 = sbr.rel (%p321) target = $region56
        $region55: #{tpu_custom_call.1} parent=51 // pred_region
          %s324 = sand.u32 %s98, 1
          %s325 = scalar_lea.sflag [#allocation4], %s324
          %s326 = sand.u32 %s98, 1
          %s327 = smul.addr %s326, 8
          %s328 = scalar_lea.vmem [#allocation8], %s327
          %330 = dma.done %s325, 128
        $region56: #{tpu_custom_call.1} parent=51 // pred_fallthru
          _
      $region52: #{tpu_custom_call.1} parent=5 // pred_fallthru
        _
    $region6: #{tpu_custom_call.1} parent=1 // loop_footer
      %s20 = sadd.s32 1, %s16
    $region7: #{tpu_custom_call.1} parent=1 // loop_footer_branch
      %15 = sbr.rel target = $region3
    $region8: #{tpu_custom_call.1} parent=1 // loop_exit
      _
    %331 = vsyncpa [#allocation3], 1
    %s332 = scalar_lea.sflag [#allocation3], 1
    %333 = vsyncpa %s332, 1
    %334 = vsyncpa [#allocation6], 1
    %335 = vsyncpa [#allocation4], 1
    %s336 = scalar_lea.sflag [#allocation4], 1
    %337 = vsyncpa %s336, 1

</llo_original>
